<compile_context>
chip_gen: v6e
topology: v6e:2x2x1
jax: 0.10.0
libtpu: 0.0.40
codegen_flags: <defaults>
</compile_context>

<pallas_src>
import functools

import jax
import jax.numpy as jnp
from jax.experimental import pallas as pl
from jax.experimental.pallas import tpu as pltpu

BN_EPS = 1e-5
LANE = 128
SUBLANE = 8
NEG_BIG = -1e30  # large-finite (not -inf) so exp() on padded experts is exactly 0, no NaN


def _round_up(n, m):
    return (n + m - 1) // m * m


def gating_kernel(x_ref, w1_ref, b1_ref, w2_ref, b2_ref, out_ref):
    # x arrives f32 (no wrapper repack); cast to bf16 for the MXU, accumulate in f32.
    x = x_ref[...].astype(jnp.bfloat16)

    # fc1 with eval-mode BatchNorm pre-folded into W1/b1.
    h = jnp.dot(x, w1_ref[...], preferred_element_type=jnp.float32) + b1_ref[...]

    # ReLU
    h = jnp.maximum(h, 0.0)

    # Dropout (eval mode) -> identity.
    # TODO(synk): training-mode dropout / batch-statistics BN not implemented (stochastic path).

    # fc2 on the lane-padded expert dim (padded columns: zero weights, bias=-1e30).
    logits = jnp.dot(h.astype(w2_ref.dtype), w2_ref[...],
                     preferred_element_type=jnp.float32) + b2_ref[...]

    # Numerically stable softmax over dim=1 (experts). Padded columns contribute exactly 0.
    m = jnp.max(logits, axis=1, keepdims=True)
    e = jnp.exp(logits - m)
    denom = jnp.sum(e, axis=1, keepdims=True)
    inv = pl.reciprocal(denom, approx=True)

    # Store only the E real expert columns (narrow masked vst, but ~E/128 of the HBM bytes).
    E = out_ref.shape[-1]
    out_ref[...] = e[:, :E] * inv


@functools.partial(jax.jit, static_argnames=("tile_b",))
def improved_gating_network(x, params, *, tile_b=512):
    """Forward pass of ImprovedGatingNetwork (eval mode).

    x: [B, input_dim] float32. params: dict from init_params().
    Returns [B, num_experts] float32 softmax gate weights.
    """
    B, d_in = x.shape
    H = params["w1"].shape[1]
    E = params["w2"].shape[1]

    # ---- wrapper-side prep (fuses under jit) ----
    # Fold eval-mode BatchNorm into fc1:  scale = gamma / sqrt(var + eps)
    scale = params["gamma"] * jax.lax.rsqrt(params["running_var"] + BN_EPS)      # [1, H]
    w1 = (params["w1"] * scale).astype(jnp.bfloat16)                             # [d_in, H]
    b1 = (params["b1"] - params["running_mean"]) * scale + params["beta"]        # [1, H] f32

    # Lane-pad the expert dimension to 128 for a full-width MXU tile.
    E_pad = _round_up(E, LANE)
    w2 = jnp.zeros((H, E_pad), jnp.bfloat16).at[:, :E].set(
        params["w2"].astype(jnp.bfloat16))
    b2 = jnp.full((1, E_pad), NEG_BIG, jnp.float32).at[:, :E].set(params["b2"])

    # Batch tiling: pad B up to a multiple of TILE_B (multiple of 8). Cap TILE_B so the
    # grid gets >=4 steps when B is large enough (lets v7x's 2 TCs each take tiles and
    # gives the pipeline steps to overlap); small B just gets one tile.
    B_ceil = _round_up(B, SUBLANE)
    TILE_B = min(tile_b, max(SUBLANE, _round_up(pl.cdiv(B_ceil, 4), SUBLANE)))
    B_pad = _round_up(B, TILE_B)

    # x stays f32; pad only the batch remainder rows (no dtype repack pass over x).
    x_p = x if B_pad == B else jnp.zeros((B_pad, d_in), x.dtype).at[:B].set(x)

    grid = (B_pad // TILE_B,)

    # Weights / biases: constant index_map -> resident in VMEM across grid steps.
    resident = lambda a: pl.BlockSpec(a.shape, lambda i: (0,) * a.ndim)

    cost = pl.CostEstimate(
        flops=2 * B_pad * (d_in * H + H * E_pad),
        transcendentals=B_pad * (E_pad + 1),                 # exp + reciprocal
        bytes_accessed=(x_p.size * 4 + w1.size * 2 + w2.size * 2
                        + b1.size * 4 + b2.size * 4 + B_pad * E * 4),
    )

    out = pl.pallas_call(
        gating_kernel,
        out_shape=jax.ShapeDtypeStruct((B_pad, E), jnp.float32),
        grid=grid,
        in_specs=[
            # x tiled over batch, f32 in HBM, cast to bf16 inside the kernel.
            # (If a trace shows exposed DMA, pipeline_mode=pl.Buffered(3) here is the knob.)
            pl.BlockSpec((TILE_B, d_in), lambda i: (i, 0)),
            resident(w1), resident(b1), resident(w2), resident(b2),
        ],
        # Last block dim == full array dim (E), so sub-128 lanes are legal here.
        out_specs=pl.BlockSpec((TILE_B, E), lambda i: (i, 0)),
        compiler_params=pltpu.CompilerParams(
            dimension_semantics=("parallel",),               # batch tiles independent (2 TCs on v7x)
            vmem_limit_bytes=32 * 1024 * 1024,               # safe on v7x's 64 MiB VMEM
        ),
        cost_estimate=cost,
    )(x_p, w1, b1, w2, b2)

    return out[:B] if B_pad != B else out


def init_params(key, input_dim, num_experts, hidden_dim=128):
    """Deterministic synthetic parameters (shapes match the PyTorch module)."""
    k1, k2, k3, k4, k5, k6 = jax.random.split(key, 6)
    # PyTorch stores Linear weight as [out, in]; we keep [in, out] for the kernel.
    w1 = jax.random.normal(k1, (input_dim, hidden_dim), jnp.float32) * 0.05
    b1 = jax.random.normal(k2, (1, hidden_dim), jnp.float32) * 0.05
    w2 = jax.random.normal(k3, (hidden_dim, num_experts), jnp.float32) * 0.05
    b2 = jax.random.normal(k4, (1, num_experts), jnp.float32) * 0.05
    gamma = 1.0 + 0.1 * jax.random.normal(k5, (1, hidden_dim), jnp.float32)
    beta = 0.1 * jax.random.normal(k6, (1, hidden_dim), jnp.float32)
    running_mean = jnp.zeros((1, hidden_dim), jnp.float32)
    running_var = jnp.ones((1, hidden_dim), jnp.float32)
    return dict(w1=w1, b1=b1, w2=w2, b2=b2, gamma=gamma, beta=beta,
                running_mean=running_mean, running_var=running_var)


def _reference(x, p):
    """Pure-f32 eval-mode reference matching the PyTorch module."""
    h = x @ p["w1"] + p["b1"]
    h = (h - p["running_mean"]) * jax.lax.rsqrt(p["running_var"] + BN_EPS) * p["gamma"] + p["beta"]
    h = jnp.maximum(h, 0.0)
    logits = h @ p["w2"] + p["b2"]
    return jax.nn.softmax(logits, axis=1)


if __name__ == "__main__":
    key = jax.random.PRNGKey(0)
    kx, kp = jax.random.split(key)

    B, input_dim, hidden_dim, num_experts = 8, 32, 128, 4
    x = jax.random.normal(kx, (B, input_dim), jnp.float32)
    params = init_params(kp, input_dim, num_experts, hidden_dim)

    out = jax.block_until_ready(improved_gating_network(x, params))
    ref = _reference(x, params)

    assert out.shape == (B, num_experts)
    assert bool(jnp.all(jnp.isfinite(out)))
    # bf16 matmuls + approx reciprocal -> compare against the f32 reference loosely.
    assert jnp.allclose(jnp.sum(out, axis=1), 1.0, atol=1e-2)
    assert jnp.allclose(out, ref, atol=1e-2, rtol=1e-2)

    print("KERNEL_OK")
</pallas_src>

<mosaic_0001>
module attributes {stable_mosaic.version = 11 : i64} {
  func.func @gating_kernel(%arg0: i32, %arg1: memref<8x32xf32, #tpu.memory_space<vmem>>, %arg2: memref<32x128xbf16, #tpu.memory_space<vmem>>, %arg3: memref<1x128xf32, #tpu.memory_space<vmem>>, %arg4: memref<128x128xbf16, #tpu.memory_space<vmem>>, %arg5: memref<1x128xf32, #tpu.memory_space<vmem>>, %arg6: memref<8x4xf32, #tpu.memory_space<vmem>>) attributes {dimension_semantics = [#tpu.dimension_semantics<parallel>], iteration_bounds = array<i64: 1>, scalar_prefetch = 0 : i64, scratch_operands = 0 : i64, tpu.core_type = #tpu.core_type<tc>, window_params = [{transform_indices = @transform_0, window_bounds = array<i64: 8, 32>}, {pipeline_mode = #tpu.pipeline_mode<synchronous>, transform_indices = @transform_1, window_bounds = array<i64: 32, 128>}, {pipeline_mode = #tpu.pipeline_mode<synchronous>, transform_indices = @transform_2, window_bounds = array<i64: 1, 128>}, {pipeline_mode = #tpu.pipeline_mode<synchronous>, transform_indices = @transform_3, window_bounds = array<i64: 128, 128>}, {pipeline_mode = #tpu.pipeline_mode<synchronous>, transform_indices = @transform_4, window_bounds = array<i64: 1, 128>}, {transform_indices = @transform_5, window_bounds = array<i64: 8, 4>}]} {
    %c0 = arith.constant 0 : index
    %c0_0 = arith.constant 0 : index
    %0 = vector.load %arg1[%c0, %c0_0] : memref<8x32xf32, #tpu.memory_space<vmem>>, vector<8x32xf32>
    %1 = arith.truncf %0 : vector<8x32xf32> to vector<8x32xbf16>
    %c0_1 = arith.constant 0 : index
    %c0_2 = arith.constant 0 : index
    %2 = vector.load %arg2[%c0_1, %c0_2] : memref<32x128xbf16, #tpu.memory_space<vmem>>, vector<32x128xbf16>
    %cst = arith.constant dense<0.000000e+00> : vector<8x128xf32>
    %3 = tpu.matmul %1, %2, %cst {dimension_numbers = #tpu.dot_dimension_numbers<[1], [0], [0], [1], [0, 0, 1, 1], [], []>} : vector<8x32xbf16>, vector<32x128xbf16>, vector<8x128xf32> -> vector<8x128xf32>
    %c0_3 = arith.constant 0 : index
    %c0_4 = arith.constant 0 : index
    %4 = vector.load %arg3[%c0_3, %c0_4] : memref<1x128xf32, #tpu.memory_space<vmem>>, vector<1x128xf32>
    %5 = vector.broadcast %4 : vector<1x128xf32> to vector<8x128xf32>
    %6 = arith.addf %3, %5 : vector<8x128xf32>
    %cst_5 = arith.constant 0.000000e+00 : f32
    %7 = vector.broadcast %cst_5 : f32 to vector<8x128xf32>
    %8 = arith.maximumf %6, %7 : vector<8x128xf32>
    %9 = arith.truncf %8 : vector<8x128xf32> to vector<8x128xbf16>
    %c0_6 = arith.constant 0 : index
    %c0_7 = arith.constant 0 : index
    %10 = vector.load %arg4[%c0_6, %c0_7] : memref<128x128xbf16, #tpu.memory_space<vmem>>, vector<128x128xbf16>
    %cst_8 = arith.constant dense<0.000000e+00> : vector<8x128xf32>
    %11 = tpu.matmul %9, %10, %cst_8 {dimension_numbers = #tpu.dot_dimension_numbers<[1], [0], [0], [1], [0, 0, 1, 1], [], []>} : vector<8x128xbf16>, vector<128x128xbf16>, vector<8x128xf32> -> vector<8x128xf32>
    %c0_9 = arith.constant 0 : index
    %c0_10 = arith.constant 0 : index
    %12 = vector.load %arg5[%c0_9, %c0_10] : memref<1x128xf32, #tpu.memory_space<vmem>>, vector<1x128xf32>
    %13 = vector.broadcast %12 : vector<1x128xf32> to vector<8x128xf32>
    %14 = arith.addf %11, %13 : vector<8x128xf32>
    %cst_11 = arith.constant dense<0xFF800000> : vector<8xf32>
    %15 = vector.multi_reduction <maximumf>, %14, %cst_11 [1] : vector<8x128xf32> to vector<8xf32>
    %16 = vector.shape_cast %15 : vector<8xf32> to vector<8x1xf32>
    %17 = vector.broadcast %16 : vector<8x1xf32> to vector<8x128xf32>
    %18 = arith.subf %14, %17 : vector<8x128xf32>
    %19 = math.exp %18 : vector<8x128xf32>
    %cst_12 = arith.constant dense<0.000000e+00> : vector<8xf32>
    %20 = vector.multi_reduction <add>, %19, %cst_12 [1] : vector<8x128xf32> to vector<8xf32>
    %21 = vector.shape_cast %20 : vector<8xf32> to vector<8x1xf32>
    %22 = tpu.reciprocal %21 {approx = true} : vector<8x1xf32> -> vector<8x1xf32>
    %23 = vector.extract_strided_slice %19 {offsets = [0, 0], sizes = [8, 4], strides = [1, 1]} : vector<8x128xf32> to vector<8x4xf32>
    %24 = vector.broadcast %22 : vector<8x1xf32> to vector<8x4xf32>
    %25 = arith.mulf %23, %24 : vector<8x4xf32>
    %c0_13 = arith.constant 0 : index
    %c0_14 = arith.constant 0 : index
    %26 = vector.load %arg6[%c0_13, %c0_14] : memref<8x4xf32, #tpu.memory_space<vmem>>, vector<8x4xf32>
    tpu.vector_store %arg6[%c0_13, %c0_14], %25 {strides = array<i32>} : memref<8x4xf32, #tpu.memory_space<vmem>>, vector<8x4xf32>,
    return
  }
  func.func @transform_0(%arg0: i32) -> (i32, i32) {
    %c0_i32 = arith.constant 0 : i32
    %c0_i32_0 = arith.constant 0 : i32
    return %arg0, %c0_i32 : i32, i32
  }
  func.func @transform_1(%arg0: i32) -> (i32, i32) {
    %c0_i32 = arith.constant 0 : i32
    %c0_i32_0 = arith.constant 0 : i32
    %c0_i32_1 = arith.constant 0 : i32
    return %c0_i32, %c0_i32_0 : i32, i32
  }
  func.func @transform_2(%arg0: i32) -> (i32, i32) {
    %c0_i32 = arith.constant 0 : i32
    %c0_i32_0 = arith.constant 0 : i32
    %c0_i32_1 = arith.constant 0 : i32
    return %c0_i32, %c0_i32_0 : i32, i32
  }
  func.func @transform_3(%arg0: i32) -> (i32, i32) {
    %c0_i32 = arith.constant 0 : i32
    %c0_i32_0 = arith.constant 0 : i32
    %c0_i32_1 = arith.constant 0 : i32
    return %c0_i32, %c0_i32_0 : i32, i32
  }
  func.func @transform_4(%arg0: i32) -> (i32, i32) {
    %c0_i32 = arith.constant 0 : i32
    %c0_i32_0 = arith.constant 0 : i32
    %c0_i32_1 = arith.constant 0 : i32
    return %c0_i32, %c0_i32_0 : i32, i32
  }
  func.func @transform_5(%arg0: i32) -> (i32, i32) {
    %c0_i32 = arith.constant 0 : i32
    %c0_i32_0 = arith.constant 0 : i32
    return %arg0, %c0_i32 : i32, i32
  }
}

</mosaic_0001>

<llo_original>
// kernel: improved_gating_network.1
$region0: #{improved_gating_network.1}
  #allocation0 [shape = 'u32[]', space=smem, size = 0x4, offset = 0x4, fixed_abs, tag = 'smem constant byte address 0x4 - core index']
  #allocation1 [shape = 'u32[144,128]{1,0:T(1,128)}', space=vmem, size = 0x12000, scoped, tag = 'internal scratch']
  %s0 = inlined_call_operand.vmem [shape: f32[8,32], index: 0, kind: input, shape index: {}]
  %s1 = inlined_call_operand.vmem [shape: bf16[32,128], index: 1, kind: input, shape index: {}]
  %s2 = inlined_call_operand.vmem [shape: f32[1,128], index: 2, kind: input, shape index: {}]
  %s3 = inlined_call_operand.vmem [shape: bf16[128,128], index: 3, kind: input, shape index: {}]
  %s4 = inlined_call_operand.vmem [shape: f32[1,128], index: 4, kind: input, shape index: {}]
  %s5 = inlined_call_operand.vmem [shape: f32[8,4], index: 5, kind: output, shape index: {}]
  %s6 = sld [smem:[#allocation0]]
  $region30: #{improved_gating_network.1} parent=0
    _
  %s8 = ssub.s32 1, %s6
  %s9 = scalar_select 0, %s8, %s6
  // Predicated region
  $region2: #{improved_gating_network.1} parent=0 // pred_check
    _
  $region3: #{improved_gating_network.1} parent=0 // pred_check_branch
    %11 = sbr.rel (0) target = $region5
  $region4: #{improved_gating_network.1} parent=0 // pred_region
    _
  $region5: #{improved_gating_network.1} parent=0 // pred_fallthru
    _
  // Predicated region
  $region6: #{improved_gating_network.1} parent=0 // pred_check
    _
  $region7: #{improved_gating_network.1} parent=0 // pred_check_branch
    %13 = sbr.rel (0) target = $region9
  $region8: #{improved_gating_network.1} parent=0 // pred_region
    _
  $region9: #{improved_gating_network.1} parent=0 // pred_fallthru
    _
  // Predicated region
  $region10: #{improved_gating_network.1} parent=0 // pred_check
    _
  $region11: #{improved_gating_network.1} parent=0 // pred_check_branch
    %15 = sbr.rel (0) target = $region13
  $region12: #{improved_gating_network.1} parent=0 // pred_region
    _
  $region13: #{improved_gating_network.1} parent=0 // pred_fallthru
    _
  // Predicated region
  $region14: #{improved_gating_network.1} parent=0 // pred_check
    _
  $region15: #{improved_gating_network.1} parent=0 // pred_check_branch
    %17 = sbr.rel (0) target = $region17
  $region16: #{improved_gating_network.1} parent=0 // pred_region
    _
  $region17: #{improved_gating_network.1} parent=0 // pred_fallthru
    _
  // Predicated region
  $region18: #{improved_gating_network.1} parent=0 // pred_check
    _
  $region19: #{improved_gating_network.1} parent=0 // pred_check_branch
    %19 = sbr.rel (0) target = $region21
  $region20: #{improved_gating_network.1} parent=0 // pred_region
    _
  $region21: #{improved_gating_network.1} parent=0 // pred_fallthru
    _
  %v21 = vld [vmem:[%s0] sm:$0xff]
  %v22 = vpack.c.bf16 %v21, %v21
  %v23 = vld [vmem:[%s1] sm:$0xf]
  %v24 = vld [vmem:[%s1 + $0x4] sm:$0xf]
  %v25 = vld [vmem:[%s1 + $0x8] sm:$0xf]
  %v26 = vld [vmem:[%s1 + $0xc] sm:$0xf]
  %v27 = vld [vmem:[%s2] sm:$0x1]
  %v29 = vlaneseq
  %v30 = vshrl.u32 %v29, 7
  %v31 = vsub.s32 0, %v30
  %v32 = vrot.slane %v27, %v31
  %v38 = vunpack.c.l.b16 %v23
  %v39 = vunpack.c.l.b16 %v24
  %v40 = vunpack.c.l.b16 %v25
  %v41 = vunpack.c.l.b16 %v26
  %v42 = vpack.c.b16 %v39, %v38
  %v43 = vpack.c.b16 %v41, %v40
  %vm46 = vcmask 261120
  %v48 = vsel %vm46, %v22, 0
  %50 = vmatprep.subr.bf16.mxu0 0
  %51 = vmatpush1.bf16.msra.mxu0 0
  %52 = vmatprep.subr.bf16.mxu0 0
  %53 = vmatpush1.bf16.msra.mxu0 0
  %54 = vmatprep.subr.bf16.mxu0 0
  %55 = vmatpush1.bf16.msra.mxu0 0
  %56 = vmatprep.subr.bf16.mxu0 0
  %57 = vmatpush1.bf16.msra.mxu0 0
  %58 = vmatprep.subr.bf16.mxu0 0
  %59 = vmatpush1.bf16.msra.mxu0 0
  %60 = vmatprep.subr.bf16.mxu0 0
  %61 = vmatpush1.bf16.msra.mxu0 0
  %62 = vmatprep.subr.bf16.mxu0 0
  %63 = vmatpush1.bf16.msra.mxu0 %v43
  %64 = vmatprep.subr.bf16.mxu0 0
  %65 = vmatpush1.bf16.msra.mxu0 %v42
  %66 = vmatprep.subr.bf16.mxu0 0
  %67 = vmatpush2.bf16.msra.mxu0 0
  %68 = vmatprep.subr.bf16.mxu0 0
  %69 = vmatpush2.bf16.msra.mxu0 0
  %70 = vmatprep.subr.bf16.mxu0 0
  %71 = vmatpush2.bf16.msra.mxu0 0
  %72 = vmatprep.subr.bf16.mxu0 0
  %73 = vmatpush2.bf16.msra.mxu0 0
  %74 = vmatprep.subr.bf16.mxu0 0
  %75 = vmatpush2.bf16.msra.mxu0 0
  %76 = vmatprep.subr.bf16.mxu0 0
  %77 = vmatpush2.bf16.msra.mxu0 0
  %78 = vmatprep.subr.bf16.mxu0 0
  %79 = vmatpush2.bf16.msra.mxu0 0
  %80 = vmatprep.subr.bf16.mxu0 0
  %81 = vmatpush2.bf16.msra.mxu0 0
  %82 = vmatprep.mubr.bf16.mxu0 0
  %83 = vmatmul.mubr.bf16.gmra.mxu0 %v48
  %v84 = vpop.f32.mrf.mxu0
  %v85 = vadd.f32 %v32, %v84
  %v86 = vpop.f32.mrf.mxu0
  %v87 = vpop.f32.mrf.mxu0
  %v88 = vpop.f32.mrf.mxu0
  %89 = vdwg.mxu0
  %v90 = vmax.f32 %v85, 0.0
  %v91 = vpack.c.bf16 %v90, %v90
  %v92 = vld [vmem:[%s3] sm:$0xf]
  %v93 = vld [vmem:[%s3 + $0x4] sm:$0xf]
  %v94 = vld [vmem:[%s3 + $0x8] sm:$0xf]
  %v95 = vld [vmem:[%s3 + $0xc] sm:$0xf]
  %v96 = vld [vmem:[%s3 + $0x10] sm:$0xf]
  %v97 = vld [vmem:[%s3 + $0x14] sm:$0xf]
  %v98 = vld [vmem:[%s3 + $0x18] sm:$0xf]
  %v99 = vld [vmem:[%s3 + $0x1c] sm:$0xf]
  %v100 = vld [vmem:[%s3 + $0x20] sm:$0xf]
  %v101 = vld [vmem:[%s3 + $0x24] sm:$0xf]
  %v102 = vld [vmem:[%s3 + $0x28] sm:$0xf]
  %v103 = vld [vmem:[%s3 + $0x2c] sm:$0xf]
  %v104 = vld [vmem:[%s3 + $0x30] sm:$0xf]
  %v105 = vld [vmem:[%s3 + $0x34] sm:$0xf]
  %v106 = vld [vmem:[%s3 + $0x38] sm:$0xf]
  %v107 = vld [vmem:[%s3 + $0x3c] sm:$0xf]
  %v108 = vld [vmem:[%s4] sm:$0x1]
  %v110 = vlaneseq
  %v111 = vshrl.u32 %v110, 7
  %v112 = vsub.s32 0, %v111
  %v113 = vrot.slane %v108, %v112
  %v131 = vunpack.c.l.b16 %v92
  %v132 = vunpack.c.l.b16 %v93
  %v133 = vunpack.c.l.b16 %v94
  %v134 = vunpack.c.l.b16 %v95
  %v135 = vunpack.c.l.b16 %v96
  %v136 = vunpack.c.l.b16 %v97
  %v137 = vunpack.c.l.b16 %v98
  %v138 = vunpack.c.l.b16 %v99
  %v139 = vunpack.c.l.b16 %v100
  %v140 = vunpack.c.l.b16 %v101
  %v141 = vunpack.c.l.b16 %v102
  %v142 = vunpack.c.l.b16 %v103
  %v143 = vunpack.c.l.b16 %v104
  %v144 = vunpack.c.l.b16 %v105
  %v145 = vunpack.c.l.b16 %v106
  %v146 = vunpack.c.l.b16 %v107
  %v147 = vpack.c.b16 %v132, %v131
  %v148 = vpack.c.b16 %v134, %v133
  %v149 = vpack.c.b16 %v136, %v135
  %v150 = vpack.c.b16 %v138, %v137
  %v151 = vpack.c.b16 %v140, %v139
  %v152 = vpack.c.b16 %v142, %v141
  %v153 = vpack.c.b16 %v144, %v143
  %v154 = vpack.c.b16 %v146, %v145
  %163 = vmatprep.subr.bf16.mxu0 0
  %164 = vmatpush1.bf16.msra.mxu0 %v154
  %165 = vmatprep.subr.bf16.mxu0 0
  %166 = vmatpush1.bf16.msra.mxu0 %v153
  %167 = vmatprep.subr.bf16.mxu0 0
  %168 = vmatpush1.bf16.msra.mxu0 %v152
  %169 = vmatprep.subr.bf16.mxu0 0
  %170 = vmatpush1.bf16.msra.mxu0 %v151
  %171 = vmatprep.subr.bf16.mxu0 0
  %172 = vmatpush1.bf16.msra.mxu0 %v150
  %173 = vmatprep.subr.bf16.mxu0 0
  %174 = vmatpush1.bf16.msra.mxu0 %v149
  %175 = vmatprep.subr.bf16.mxu0 0
  %176 = vmatpush1.bf16.msra.mxu0 %v148
  %177 = vmatprep.subr.bf16.mxu0 0
  %178 = vmatpush1.bf16.msra.mxu0 %v147
  %179 = vmatprep.subr.bf16.mxu0 0
  %180 = vmatpush2.bf16.msra.mxu0 0
  %181 = vmatprep.subr.bf16.mxu0 0
  %182 = vmatpush2.bf16.msra.mxu0 0
  %183 = vmatprep.subr.bf16.mxu0 0
  %184 = vmatpush2.bf16.msra.mxu0 0
  %185 = vmatprep.subr.bf16.mxu0 0
  %186 = vmatpush2.bf16.msra.mxu0 0
  %187 = vmatprep.subr.bf16.mxu0 0
  %188 = vmatpush2.bf16.msra.mxu0 0
  %189 = vmatprep.subr.bf16.mxu0 0
  %190 = vmatpush2.bf16.msra.mxu0 0
  %191 = vmatprep.subr.bf16.mxu0 0
  %192 = vmatpush2.bf16.msra.mxu0 0
  %193 = vmatprep.subr.bf16.mxu0 0
  %194 = vmatpush2.bf16.msra.mxu0 0
  %195 = vmatprep.mubr.bf16.mxu0 0
  %196 = vmatmul.mubr.bf16.gmra.mxu0 %v91
  %v197 = vpop.f32.mrf.mxu0
  %v198 = vadd.f32 %v113, %v197
  %v199 = vpop.f32.mrf.mxu0
  %v200 = vpop.f32.mrf.mxu0
  %v201 = vpop.f32.mrf.mxu0
  %202 = vdwg.mxu0
  %203 = vmax.xlane.f32.xlu0 %v198
  %v204 = vpop.xlane.xlu0 %203
  %v205 = vsub.f32 %v198, %v204
  %v206 = vmul.f32 %v205, 1.442695
  %v207 = vpow.pop %v206
  %208 = vadd.xlane.f32.xlu0 %v207
  %v209 = vpop.xlane.xlu0 %208
  %v210 = vrcp.pop %v209
  %v211 = vmul.f32 %v207, %v210
  %vm212 = vcmask 31744
  %213 = vst.msk [vmem:[%s5] sm:$0xff] %vm212, %v211
  // Predicated region
  $region22: #{improved_gating_network.1} parent=0 // pred_check
    _
  $region23: #{improved_gating_network.1} parent=0 // pred_check_branch
    %215 = sbr.rel (0) target = $region25
  $region24: #{improved_gating_network.1} parent=0 // pred_region
    _
  $region25: #{improved_gating_network.1} parent=0 // pred_fallthru
    _
  // Predicated region
  $region26: #{improved_gating_network.1} parent=0 // pred_check
    _
  $region27: #{improved_gating_network.1} parent=0 // pred_check_branch
    %217 = sbr.rel (0) target = $region29
  $region28: #{improved_gating_network.1} parent=0 // pred_region
    _
  $region29: #{improved_gating_network.1} parent=0 // pred_fallthru
    _

</llo_original>
